<compile_context>
chip_gen: v5e
topology: v5e:2x2
jax: 0.10.0
libtpu: 0.0.40
codegen_flags: <defaults>
</compile_context>

<pallas_src>
import numpy as np
import jax
import jax.numpy as jnp
from jax.experimental import pallas as pl
from jax.experimental.pallas import tpu as pltpu

NEG_SLOPE = 0.2


def _leaky(x):
    return jnp.where(x > 0, x, NEG_SLOPE * x)


def residual_block_kernel(x_ref, w1_ref, b1_ref, w2_ref, w0_ref, bsum_ref,
                          out_ref):
    # x_ref:    (G, Hs, L)  f32   G images, Hs super-rows of L = F*W*C lanes
    # w1_ref:   (3, L, L)   bf16  banded 3x3 conv #1 (one matrix per super-row tap)
    # b1_ref:   (1, L)      f32   conv #1 bias, tiled along F*W
    # w2_ref:   (3, L, L)   bf16  banded 3x3 conv #2
    # w0_ref:   (L, L)      bf16  block-diagonal 1x1 residual conv
    # bsum_ref: (1, L)      f32   (b2 + b0), tiled along F*W
    # out_ref:  (G, Hs, L)
    G, Hs, L = x_ref.shape
    M = G * Hs
    mdt = w1_ref.dtype  # bf16 matmul-operand dtype

    x = x_ref[...].reshape(M, L)  # f32, lane-dense

    # Masks that zero the super-row-shifted contributions across image
    # boundaries (only needed when several images are stacked in one block;
    # for G == 1 the zero-row concat below already handles the two halos).
    if G > 1:
        srow = jax.lax.broadcasted_iota(jnp.int32, (G, Hs, L), 1).reshape(M, L)
        not_first = srow != 0
        not_last = srow != Hs - 1
    else:
        not_first = None
        not_last = None

    zrow = jnp.zeros((1, L), jnp.float32)

    def conv3x3(a_bf16, w_ref):
        # a_bf16: (M, L) bf16 activations (leaky already applied; leaky(0)==0
        # so the implicit zero halo rows are valid conv padding).
        t0 = jnp.dot(a_bf16, w_ref[0], preferred_element_type=jnp.float32)
        t1 = jnp.dot(a_bf16, w_ref[1], preferred_element_type=jnp.float32)
        t2 = jnp.dot(a_bf16, w_ref[2], preferred_element_type=jnp.float32)
        # Output super-row s needs: t0[s-1] + t1[s] + t2[s+1] (zero past edges).
        dn = jnp.concatenate([zrow, t0[:M - 1, :]], axis=0)   # dn[s] = t0[s-1]
        up = jnp.concatenate([t2[1:, :], zrow], axis=0)       # up[s] = t2[s+1]
        if not_first is not None:
            dn = jnp.where(not_first, dn, 0.0)
            up = jnp.where(not_last, up, 0.0)
        return dn + t1 + up

    # conv 3x3 #1 on LeakyReLU(x)
    y1 = conv3x3(_leaky(x).astype(mdt), w1_ref) + b1_ref[...]
    # conv 3x3 #2 on LeakyReLU(y1)
    y2 = conv3x3(_leaky(y1).astype(mdt), w2_ref)
    # 1x1 residual conv on the ORIGINAL (un-activated) input
    y0 = jnp.dot(x.astype(mdt), w0_ref[...], preferred_element_type=jnp.float32)

    out = y2 + y0 + bsum_ref[...]
    out_ref[...] = out.reshape(G, Hs, L).astype(out_ref.dtype)


def _device_traits():
    """(wide_mxu, two_cores) from the device kind; safe fallbacks otherwise."""
    try:
        kind = jax.devices()[0].device_kind.lower()
    except Exception:
        kind = ""
    wide_mxu = ("v6" in kind) or ("v7" in kind)            # 256-wide MXU tiles
    two_cores = ("v7" in kind) or ("v4" in kind) or ("v5p" in kind)
    return wide_mxu, two_cores


def _pick_fold(H, WC, target_lanes):
    """Largest row-fold F dividing H with F*WC <= target_lanes."""
    best = 1
    for f in range(1, H + 1):
        if H % f == 0 and f * WC <= target_lanes:
            best = f
    return best


def _pack_banded_3x3(w_hwio, W, C, F):
    """(3,3,C,C) HWIO -> (3, F*W*C, F*W*C) bf16 banded super-row taps.

    Tap D in {0,1,2} couples input super-row (r + D - 1) to output super-row r:
      M_D[(fi,v,ci),(fo,w,co)] = w[dy+1, dx+1, ci, co]
        with dy = (D-1)*F + fi - fo in [-1,1], dx = v - w in [-1,1], else 0.
    The 3x3 spatial taps, the zero padding along W and the row fold are all
    baked into the band, so the kernel only does 3 big-K matmuls per conv.
    """
    L = F * W * C
    S = np.zeros((3, F, W, F, W, 3, 3), np.float32)
    for D in range(3):
        for fi in range(F):
            for fo in range(F):
                dy = (D - 1) * F + fi - fo
                if dy < -1 or dy > 1:
                    continue
                for v in range(W):
                    for w in range(W):
                        dx = v - w
                        if -1 <= dx <= 1:
                            S[D, fi, v, fo, w, dy + 1, dx + 1] = 1.0
    m = jnp.einsum('davbwyx,yxio->davibwo', jnp.asarray(S), w_hwio)
    return m.reshape(3, L, L).astype(jnp.bfloat16)


def residual_block(x_nchw, params):
    """x_nchw: (B, C, H, W) float32 — mirrors the PyTorch interface."""
    w1, b1, w2, b2, w0, b0 = params
    B, C, H, W = x_nchw.shape

    wide_mxu, two_cores = _device_traits()
    target_lanes = 256 if wide_mxu else 128
    F = _pick_fold(H, W * C, target_lanes)   # rows folded into the lane axis
    Hs = H // F
    L = F * W * C

    # Images per grid step: whole batch on 1-TC chips (amortize grid overhead,
    # bigger matmul M); 2 parallel blocks on 2-TC chips (megacore sharding).
    if two_cores:
        G = B // 2 if (B >= 2 and B % 2 == 0) else 1
    else:
        G = B
    num_blocks = B // G

    # NCHW -> NHWC -> (B, Hs, F*W*C): channel fastest, F rows folded into lanes.
    x = jnp.transpose(x_nchw, (0, 2, 3, 1)).reshape(B, Hs, L)

    w1d = _pack_banded_3x3(w1, W, C, F)
    w2d = _pack_banded_3x3(w2, W, C, F)
    # Block-diagonal 1x1 conv: F*W copies of (C, C) on the diagonal.
    w0d = jnp.einsum('pq,io->piqo', jnp.eye(F * W, dtype=jnp.float32), w0)
    w0d = w0d.reshape(L, L).astype(jnp.bfloat16)

    b1t = jnp.tile(b1, F * W).reshape(1, L)
    bst = jnp.tile(b2 + b0, F * W).reshape(1, L)   # conv#2 bias + 1x1 bias fused

    out = pl.pallas_call(
        residual_block_kernel,
        out_shape=jax.ShapeDtypeStruct((B, Hs, L), x_nchw.dtype),
        grid=(num_blocks,),
        in_specs=[
            pl.BlockSpec((G, Hs, L), lambda b: (b, 0, 0)),   # x
            pl.BlockSpec((3, L, L), lambda b: (0, 0, 0)),    # w1 (banded)
            pl.BlockSpec((1, L), lambda b: (0, 0)),          # b1
            pl.BlockSpec((3, L, L), lambda b: (0, 0, 0)),    # w2 (banded)
            pl.BlockSpec((L, L), lambda b: (0, 0)),          # w0 (block-diag)
            pl.BlockSpec((1, L), lambda b: (0, 0)),          # b2 + b0
        ],
        out_specs=pl.BlockSpec((G, Hs, L), lambda b: (b, 0, 0)),
        compiler_params=pltpu.CompilerParams(
            dimension_semantics=("parallel",)),
    )(x, w1d, b1t, w2d, w0d, bst)

    return jnp.transpose(out.reshape(B, H, W, C), (0, 3, 1, 2))


def init_params(key, C):
    """Deterministic PyTorch-style uniform(-1/sqrt(fan_in), 1/sqrt(fan_in)) init."""
    ks = jax.random.split(key, 6)

    def u(k, shape, fan_in):
        bound = 1.0 / jnp.sqrt(jnp.float32(fan_in))
        return jax.random.uniform(k, shape, jnp.float32, -bound, bound)

    w1 = u(ks[0], (3, 3, C, C), C * 9)   # HWIO
    b1 = u(ks[1], (C,), C * 9)
    w2 = u(ks[2], (3, 3, C, C), C * 9)
    b2 = u(ks[3], (C,), C * 9)
    w0 = u(ks[4], (C, C), C)             # (in, out) for the 1x1 conv
    b0 = u(ks[5], (C,), C)
    return w1, b1, w2, b2, w0, b0


def reference(x_nchw, params):
    """Pure-JAX reference (lax.conv) with the same bf16-operand / f32-accumulate
    precision as the kernel's MXU path."""
    w1, b1, w2, b2, w0, b0 = params
    x = jnp.transpose(x_nchw, (0, 2, 3, 1))

    def conv(inp_bf16, w, b):
        y = jax.lax.conv_general_dilated(
            inp_bf16, w.astype(jnp.bfloat16), (1, 1), "SAME",
            dimension_numbers=("NHWC", "HWIO", "NHWC"),
            preferred_element_type=jnp.float32)
        return y + b.reshape(1, 1, 1, -1)

    y1 = conv(_leaky(x).astype(jnp.bfloat16), w1, b1)
    y2 = conv(_leaky(y1).astype(jnp.bfloat16), w2, b2)
    y0 = conv(x.astype(jnp.bfloat16), w0.reshape(1, 1, *w0.shape), b0)
    return jnp.transpose(y2 + y0, (0, 3, 1, 2))


if __name__ == "__main__":
    key = jax.random.PRNGKey(0)
    kx, kp = jax.random.split(key)

    B, C, H, W = 2, 4, 16, 16
    x = jax.random.normal(kx, (B, C, H, W), jnp.float32)
    params = init_params(kp, C)

    out = residual_block(x, params)
    jax.block_until_ready(out)

    ref = reference(x, params)
    assert out.shape == (B, C, H, W)
    err = float(jnp.max(jnp.abs(out - ref)))
    assert jnp.allclose(out, ref, atol=2e-3, rtol=2e-3), err

    print("KERNEL_OK")
</pallas_src>

<mosaic_0001>
module attributes {stable_mosaic.version = 11 : i64} {
  func.func @residual_block_kernel(%arg0: i32, %arg1: memref<2x8x128xf32, #tpu.memory_space<vmem>>, %arg2: memref<3x128x128xbf16, #tpu.memory_space<vmem>>, %arg3: memref<1x128xf32, #tpu.memory_space<vmem>>, %arg4: memref<3x128x128xbf16, #tpu.memory_space<vmem>>, %arg5: memref<128x128xbf16, #tpu.memory_space<vmem>>, %arg6: memref<1x128xf32, #tpu.memory_space<vmem>>, %arg7: memref<2x8x128xf32, #tpu.memory_space<vmem>>) attributes {dimension_semantics = [#tpu.dimension_semantics<parallel>], iteration_bounds = array<i64: 1>, scalar_prefetch = 0 : i64, scratch_operands = 0 : i64, tpu.core_type = #tpu.core_type<tc>, window_params = [{transform_indices = @transform_0, window_bounds = array<i64: 2, 8, 128>}, {pipeline_mode = #tpu.pipeline_mode<synchronous>, transform_indices = @transform_1, window_bounds = array<i64: 3, 128, 128>}, {pipeline_mode = #tpu.pipeline_mode<synchronous>, transform_indices = @transform_2, window_bounds = array<i64: 1, 128>}, {pipeline_mode = #tpu.pipeline_mode<synchronous>, transform_indices = @transform_3, window_bounds = array<i64: 3, 128, 128>}, {pipeline_mode = #tpu.pipeline_mode<synchronous>, transform_indices = @transform_4, window_bounds = array<i64: 128, 128>}, {pipeline_mode = #tpu.pipeline_mode<synchronous>, transform_indices = @transform_5, window_bounds = array<i64: 1, 128>}, {transform_indices = @transform_6, window_bounds = array<i64: 2, 8, 128>}]} {
    %c0 = arith.constant 0 : index
    %c0_0 = arith.constant 0 : index
    %c0_1 = arith.constant 0 : index
    %0 = vector.load %arg1[%c0, %c0_0, %c0_1] : memref<2x8x128xf32, #tpu.memory_space<vmem>>, vector<2x8x128xf32>
    %1 = vector.shape_cast %0 : vector<2x8x128xf32> to vector<16x128xf32>
    %2 = tpu.iota {dimensions = array<i32: 1>} : vector<2x8x128xi32>
    %3 = vector.shape_cast %2 : vector<2x8x128xi32> to vector<16x128xi32>
    %c0_i32 = arith.constant 0 : i32
    %4 = vector.broadcast %c0_i32 : i32 to vector<16x128xi32>
    %5 = arith.cmpi ne, %3, %4 : vector<16x128xi32>
    %c7_i32 = arith.constant 7 : i32
    %6 = vector.broadcast %c7_i32 : i32 to vector<16x128xi32>
    %7 = arith.cmpi ne, %3, %6 : vector<16x128xi32>
    %cst = arith.constant 0.000000e+00 : f32
    %8 = vector.broadcast %cst : f32 to vector<1x128xf32>
    %cst_2 = arith.constant 0.000000e+00 : f32
    %9 = vector.broadcast %cst_2 : f32 to vector<16x128xf32>
    %10 = arith.cmpf ogt, %1, %9 : vector<16x128xf32>
    %cst_3 = arith.constant 2.000000e-01 : f32
    %11 = vector.broadcast %cst_3 : f32 to vector<16x128xf32>
    %12 = arith.mulf %11, %1 : vector<16x128xf32>
    %13 = arith.select %10, %1, %12 : vector<16x128xi1>, vector<16x128xf32>
    %14 = arith.truncf %13 : vector<16x128xf32> to vector<16x128xbf16>
    %c0_4 = arith.constant 0 : index
    %c0_5 = arith.constant 0 : index
    %c0_6 = arith.constant 0 : index
    %15 = vector.load %arg2[%c0_4, %c0_5, %c0_6] : memref<3x128x128xbf16, #tpu.memory_space<vmem>>, vector<1x128x128xbf16>
    %16 = vector.shape_cast %15 : vector<1x128x128xbf16> to vector<128x128xbf16>
    %cst_7 = arith.constant dense<0.000000e+00> : vector<16x128xf32>
    %17 = tpu.matmul %14, %16, %cst_7 {dimension_numbers = #tpu.dot_dimension_numbers<[1], [0], [0], [1], [0, 0, 1, 1], [], []>} : vector<16x128xbf16>, vector<128x128xbf16>, vector<16x128xf32> -> vector<16x128xf32>
    %c1 = arith.constant 1 : index
    %c0_8 = arith.constant 0 : index
    %c0_9 = arith.constant 0 : index
    %18 = vector.load %arg2[%c1, %c0_8, %c0_9] : memref<3x128x128xbf16, #tpu.memory_space<vmem>>, vector<1x128x128xbf16>
    %19 = vector.shape_cast %18 : vector<1x128x128xbf16> to vector<128x128xbf16>
    %cst_10 = arith.constant dense<0.000000e+00> : vector<16x128xf32>
    %20 = tpu.matmul %14, %19, %cst_10 {dimension_numbers = #tpu.dot_dimension_numbers<[1], [0], [0], [1], [0, 0, 1, 1], [], []>} : vector<16x128xbf16>, vector<128x128xbf16>, vector<16x128xf32> -> vector<16x128xf32>
    %c2 = arith.constant 2 : index
    %c0_11 = arith.constant 0 : index
    %c0_12 = arith.constant 0 : index
    %21 = vector.load %arg2[%c2, %c0_11, %c0_12] : memref<3x128x128xbf16, #tpu.memory_space<vmem>>, vector<1x128x128xbf16>
    %22 = vector.shape_cast %21 : vector<1x128x128xbf16> to vector<128x128xbf16>
    %cst_13 = arith.constant dense<0.000000e+00> : vector<16x128xf32>
    %23 = tpu.matmul %14, %22, %cst_13 {dimension_numbers = #tpu.dot_dimension_numbers<[1], [0], [0], [1], [0, 0, 1, 1], [], []>} : vector<16x128xbf16>, vector<128x128xbf16>, vector<16x128xf32> -> vector<16x128xf32>
    %24 = vector.extract_strided_slice %17 {offsets = [0, 0], sizes = [15, 128], strides = [1, 1]} : vector<16x128xf32> to vector<15x128xf32>
    %25 = tpu.concatenate %8, %24 in 0 : vector<1x128xf32>, vector<15x128xf32> -> vector<16x128xf32>
    %26 = vector.extract_strided_slice %23 {offsets = [1, 0], sizes = [15, 128], strides = [1, 1]} : vector<16x128xf32> to vector<15x128xf32>
    %27 = tpu.concatenate %26, %8 in 0 : vector<15x128xf32>, vector<1x128xf32> -> vector<16x128xf32>
    %cst_14 = arith.constant 0.000000e+00 : f32
    %28 = vector.broadcast %cst_14 : f32 to vector<16x128xf32>
    %29 = arith.select %5, %25, %28 : vector<16x128xi1>, vector<16x128xf32>
    %cst_15 = arith.constant 0.000000e+00 : f32
    %30 = vector.broadcast %cst_15 : f32 to vector<16x128xf32>
    %31 = arith.select %7, %27, %30 : vector<16x128xi1>, vector<16x128xf32>
    %32 = arith.addf %29, %20 : vector<16x128xf32>
    %33 = arith.addf %32, %31 : vector<16x128xf32>
    %c0_16 = arith.constant 0 : index
    %c0_17 = arith.constant 0 : index
    %34 = vector.load %arg3[%c0_16, %c0_17] : memref<1x128xf32, #tpu.memory_space<vmem>>, vector<1x128xf32>
    %35 = vector.broadcast %34 : vector<1x128xf32> to vector<16x128xf32>
    %36 = arith.addf %33, %35 : vector<16x128xf32>
    %cst_18 = arith.constant 0.000000e+00 : f32
    %37 = vector.broadcast %cst_18 : f32 to vector<16x128xf32>
    %38 = arith.cmpf ogt, %36, %37 : vector<16x128xf32>
    %cst_19 = arith.constant 2.000000e-01 : f32
    %39 = vector.broadcast %cst_19 : f32 to vector<16x128xf32>
    %40 = arith.mulf %39, %36 : vector<16x128xf32>
    %41 = arith.select %38, %36, %40 : vector<16x128xi1>, vector<16x128xf32>
    %42 = arith.truncf %41 : vector<16x128xf32> to vector<16x128xbf16>
    %c0_20 = arith.constant 0 : index
    %c0_21 = arith.constant 0 : index
    %c0_22 = arith.constant 0 : index
    %43 = vector.load %arg4[%c0_20, %c0_21, %c0_22] : memref<3x128x128xbf16, #tpu.memory_space<vmem>>, vector<1x128x128xbf16>
    %44 = vector.shape_cast %43 : vector<1x128x128xbf16> to vector<128x128xbf16>
    %cst_23 = arith.constant dense<0.000000e+00> : vector<16x128xf32>
    %45 = tpu.matmul %42, %44, %cst_23 {dimension_numbers = #tpu.dot_dimension_numbers<[1], [0], [0], [1], [0, 0, 1, 1], [], []>} : vector<16x128xbf16>, vector<128x128xbf16>, vector<16x128xf32> -> vector<16x128xf32>
    %c1_24 = arith.constant 1 : index
    %c0_25 = arith.constant 0 : index
    %c0_26 = arith.constant 0 : index
    %46 = vector.load %arg4[%c1_24, %c0_25, %c0_26] : memref<3x128x128xbf16, #tpu.memory_space<vmem>>, vector<1x128x128xbf16>
    %47 = vector.shape_cast %46 : vector<1x128x128xbf16> to vector<128x128xbf16>
    %cst_27 = arith.constant dense<0.000000e+00> : vector<16x128xf32>
    %48 = tpu.matmul %42, %47, %cst_27 {dimension_numbers = #tpu.dot_dimension_numbers<[1], [0], [0], [1], [0, 0, 1, 1], [], []>} : vector<16x128xbf16>, vector<128x128xbf16>, vector<16x128xf32> -> vector<16x128xf32>
    %c2_28 = arith.constant 2 : index
    %c0_29 = arith.constant 0 : index
    %c0_30 = arith.constant 0 : index
    %49 = vector.load %arg4[%c2_28, %c0_29, %c0_30] : memref<3x128x128xbf16, #tpu.memory_space<vmem>>, vector<1x128x128xbf16>
    %50 = vector.shape_cast %49 : vector<1x128x128xbf16> to vector<128x128xbf16>
    %cst_31 = arith.constant dense<0.000000e+00> : vector<16x128xf32>
    %51 = tpu.matmul %42, %50, %cst_31 {dimension_numbers = #tpu.dot_dimension_numbers<[1], [0], [0], [1], [0, 0, 1, 1], [], []>} : vector<16x128xbf16>, vector<128x128xbf16>, vector<16x128xf32> -> vector<16x128xf32>
    %52 = vector.extract_strided_slice %45 {offsets = [0, 0], sizes = [15, 128], strides = [1, 1]} : vector<16x128xf32> to vector<15x128xf32>
    %53 = tpu.concatenate %8, %52 in 0 : vector<1x128xf32>, vector<15x128xf32> -> vector<16x128xf32>
    %54 = vector.extract_strided_slice %51 {offsets = [1, 0], sizes = [15, 128], strides = [1, 1]} : vector<16x128xf32> to vector<15x128xf32>
    %55 = tpu.concatenate %54, %8 in 0 : vector<15x128xf32>, vector<1x128xf32> -> vector<16x128xf32>
    %cst_32 = arith.constant 0.000000e+00 : f32
    %56 = vector.broadcast %cst_32 : f32 to vector<16x128xf32>
    %57 = arith.select %5, %53, %56 : vector<16x128xi1>, vector<16x128xf32>
    %cst_33 = arith.constant 0.000000e+00 : f32
    %58 = vector.broadcast %cst_33 : f32 to vector<16x128xf32>
    %59 = arith.select %7, %55, %58 : vector<16x128xi1>, vector<16x128xf32>
    %60 = arith.addf %57, %48 : vector<16x128xf32>
    %61 = arith.addf %60, %59 : vector<16x128xf32>
    %62 = arith.truncf %1 : vector<16x128xf32> to vector<16x128xbf16>
    %c0_34 = arith.constant 0 : index
    %c0_35 = arith.constant 0 : index
    %63 = vector.load %arg5[%c0_34, %c0_35] : memref<128x128xbf16, #tpu.memory_space<vmem>>, vector<128x128xbf16>
    %cst_36 = arith.constant dense<0.000000e+00> : vector<16x128xf32>
    %64 = tpu.matmul %62, %63, %cst_36 {dimension_numbers = #tpu.dot_dimension_numbers<[1], [0], [0], [1], [0, 0, 1, 1], [], []>} : vector<16x128xbf16>, vector<128x128xbf16>, vector<16x128xf32> -> vector<16x128xf32>
    %65 = arith.addf %61, %64 : vector<16x128xf32>
    %c0_37 = arith.constant 0 : index
    %c0_38 = arith.constant 0 : index
    %66 = vector.load %arg6[%c0_37, %c0_38] : memref<1x128xf32, #tpu.memory_space<vmem>>, vector<1x128xf32>
    %67 = vector.broadcast %66 : vector<1x128xf32> to vector<16x128xf32>
    %68 = arith.addf %65, %67 : vector<16x128xf32>
    %69 = vector.shape_cast %68 : vector<16x128xf32> to vector<2x8x128xf32>
    %c0_39 = arith.constant 0 : index
    %c0_40 = arith.constant 0 : index
    %c0_41 = arith.constant 0 : index
    %70 = vector.load %arg7[%c0_39, %c0_40, %c0_41] : memref<2x8x128xf32, #tpu.memory_space<vmem>>, vector<2x8x128xf32>
    tpu.vector_store %arg7[%c0_39, %c0_40, %c0_41], %69 {strides = array<i32>} : memref<2x8x128xf32, #tpu.memory_space<vmem>>, vector<2x8x128xf32>,
    return
  }
  func.func @transform_0(%arg0: i32) -> (i32, i32, i32) {
    %c0_i32 = arith.constant 0 : i32
    %c0_i32_0 = arith.constant 0 : i32
    %c0_i32_1 = arith.constant 0 : i32
    return %arg0, %c0_i32, %c0_i32_0 : i32, i32, i32
  }
  func.func @transform_1(%arg0: i32) -> (i32, i32, i32) {
    %c0_i32 = arith.constant 0 : i32
    %c0_i32_0 = arith.constant 0 : i32
    %c0_i32_1 = arith.constant 0 : i32
    %c0_i32_2 = arith.constant 0 : i32
    return %c0_i32, %c0_i32_0, %c0_i32_1 : i32, i32, i32
  }
  func.func @transform_2(%arg0: i32) -> (i32, i32) {
    %c0_i32 = arith.constant 0 : i32
    %c0_i32_0 = arith.constant 0 : i32
    %c0_i32_1 = arith.constant 0 : i32
    return %c0_i32, %c0_i32_0 : i32, i32
  }
  func.func @transform_3(%arg0: i32) -> (i32, i32, i32) {
    %c0_i32 = arith.constant 0 : i32
    %c0_i32_0 = arith.constant 0 : i32
    %c0_i32_1 = arith.constant 0 : i32
    %c0_i32_2 = arith.constant 0 : i32
    return %c0_i32, %c0_i32_0, %c0_i32_1 : i32, i32, i32
  }
  func.func @transform_4(%arg0: i32) -> (i32, i32) {
    %c0_i32 = arith.constant 0 : i32
    %c0_i32_0 = arith.constant 0 : i32
    %c0_i32_1 = arith.constant 0 : i32
    return %c0_i32, %c0_i32_0 : i32, i32
  }
  func.func @transform_5(%arg0: i32) -> (i32, i32) {
    %c0_i32 = arith.constant 0 : i32
    %c0_i32_0 = arith.constant 0 : i32
    %c0_i32_1 = arith.constant 0 : i32
    return %c0_i32, %c0_i32_0 : i32, i32
  }
  func.func @transform_6(%arg0: i32) -> (i32, i32, i32) {
    %c0_i32 = arith.constant 0 : i32
    %c0_i32_0 = arith.constant 0 : i32
    %c0_i32_1 = arith.constant 0 : i32
    return %arg0, %c0_i32, %c0_i32_0 : i32, i32, i32
  }
}

</mosaic_0001>

<llo_original>
// kernel: tpu_custom_call.1
$region0: #{tpu_custom_call.1}
  #allocation0 [shape = 'u32[]', space=smem, size = 0x4, offset = 0x4, fixed_abs, tag = 'smem constant byte address 0x4 - core index']
  #allocation1 [shape = 'u32[72,128]{1,0:T(1,128)}', space=vmem, size = 0x9000, scoped, tag = 'internal scratch']
  %s0 = inlined_call_operand.hbm [shape: f32[2,8,128], index: 0, kind: input, shape index: {}]
  %s1 = inlined_call_operand.hbm [shape: bf16[3,128,128], index: 1, kind: input, shape index: {}]
  %s2 = inlined_call_operand.vmem [shape: f32[1,128], index: 2, kind: input, shape index: {}]
  %s3 = inlined_call_operand.hbm [shape: bf16[3,128,128], index: 3, kind: input, shape index: {}]
  %s4 = inlined_call_operand.hbm [shape: bf16[128,128], index: 4, kind: input, shape index: {}]
  %s5 = inlined_call_operand.vmem [shape: f32[1,128], index: 5, kind: input, shape index: {}]
  %s6 = inlined_call_operand.hbm [shape: f32[2,8,128], index: 6, kind: output, shape index: {}]
  %s7 = sld [smem:[#allocation0]]
  $region50: #{tpu_custom_call.1} parent=0
    _
  %s9 = ssub.s32 1, %s7
  %s10 = scalar_select 0, %s9, %s7
  $region1: #{tpu_custom_call.1} parent=0
    #allocation2 [shape = 'u8[8192]{0}', space=vmem, size = 0x2000, scoped, tag = 'input window, operand 0, single buffered']
    #allocation3 [shape = 's32[1]{0}', space=sflag, size = 0x4, scoped, tag = 'scoped memory for tpu_custom_call.1']
    #allocation4 [shape = 's32[1]{0}', space=sflag, size = 0x4, scoped, tag = 'scoped memory for tpu_custom_call.1']
    #allocation5 [shape = 'u8[98304]{0}', space=vmem, size = 0x18000, scoped, tag = 'input window, operand 1, single buffered']
    #allocation6 [shape = 's32[1]{0}', space=sflag, size = 0x4, scoped, tag = 'scoped memory for tpu_custom_call.1']
    #allocation7 [shape = 'u8[98304]{0}', space=vmem, size = 0x18000, scoped, tag = 'input window, operand 3, single buffered']
    #allocation8 [shape = 'u8[32768]{0}', space=vmem, size = 0x8000, scoped, tag = 'input window, operand 4, single buffered']
    #allocation9 [shape = 's32[1]{0}', space=sflag, size = 0x4, scoped, tag = 'scoped memory for tpu_custom_call.1']
    #allocation10 [shape = 'u8[8192]{0}', space=vmem, size = 0x2000, scoped, tag = 'output window, operand 0, single buffered']
    %11 = vsyncpa [#allocation3], 0
    %12 = vsyncpa [#allocation6], 0
    %13 = vsyncpa [#allocation9], 0
    %14 = vsyncpa [#allocation4], 0
    // Predicated region
    $region2: #{tpu_custom_call.1} parent=1 // pred_check
      _
    $region3: #{tpu_custom_call.1} parent=1 // pred_check_branch
      %16 = sbr.rel (0) target = $region5
    $region4: #{tpu_custom_call.1} parent=1 // pred_region
      %18 = vsyncadd [#allocation3], 0
      %s19 = sshll.u32 %s0, 4
      %s20 = int_to_ptr.hbm [resolvable:$true] %s19
      %s21 = sshll.u32 [#allocation2], 4
      %s22 = int_to_ptr.vmem [resolvable:$true] %s21
      %27 = dma.hbm_to_vmem [thread:$0]  %s20, 256, %s22, [#allocation3], 128, 128, 8
    $region5: #{tpu_custom_call.1} parent=1 // pred_fallthru
      _
    // Predicated region
    $region6: #{tpu_custom_call.1} parent=1 // pred_check
      _
    $region7: #{tpu_custom_call.1} parent=1 // pred_check_branch
      %29 = sbr.rel (0) target = $region9
    $region8: #{tpu_custom_call.1} parent=1 // pred_region
      %31 = vsyncadd [#allocation6], 0
      %s32 = sshll.u32 %s1, 4
      %s33 = int_to_ptr.hbm [resolvable:$true] %s32
      %s34 = sshll.u32 [#allocation5], 4
      %s35 = int_to_ptr.vmem [resolvable:$true] %s34
      %40 = dma.hbm_to_vmem [thread:$0]  %s33, 3072, %s35, [#allocation6], 64, 64, 4
    $region9: #{tpu_custom_call.1} parent=1 // pred_fallthru
      _
    // Predicated region
    $region10: #{tpu_custom_call.1} parent=1 // pred_check
      _
    $region11: #{tpu_custom_call.1} parent=1 // pred_check_branch
      %42 = sbr.rel (0) target = $region13
    $region12: #{tpu_custom_call.1} parent=1 // pred_region
      _
    $region13: #{tpu_custom_call.1} parent=1 // pred_fallthru
      _
    // Predicated region
    $region14: #{tpu_custom_call.1} parent=1 // pred_check
      _
    $region15: #{tpu_custom_call.1} parent=1 // pred_check_branch
      %44 = sbr.rel (0) target = $region17
    $region16: #{tpu_custom_call.1} parent=1 // pred_region
      %46 = vsyncadd [#allocation6], 0
      %s47 = sshll.u32 %s3, 4
      %s48 = int_to_ptr.hbm [resolvable:$true] %s47
      %s49 = sshll.u32 [#allocation7], 4
      %s50 = int_to_ptr.vmem [resolvable:$true] %s49
      %55 = dma.hbm_to_vmem [thread:$0]  %s48, 3072, %s50, [#allocation6], 64, 64, 4
    $region17: #{tpu_custom_call.1} parent=1 // pred_fallthru
      _
    // Predicated region
    $region18: #{tpu_custom_call.1} parent=1 // pred_check
      _
    $region19: #{tpu_custom_call.1} parent=1 // pred_check_branch
      %57 = sbr.rel (0) target = $region21
    $region20: #{tpu_custom_call.1} parent=1 // pred_region
      %59 = vsyncadd [#allocation9], 0
      %s60 = sshll.u32 %s4, 4
      %s61 = int_to_ptr.hbm [resolvable:$true] %s60
      %s62 = sshll.u32 [#allocation8], 4
      %s63 = int_to_ptr.vmem [resolvable:$true] %s62
      %68 = dma.hbm_to_vmem [thread:$0]  %s61, 1024, %s63, [#allocation9], 64, 64, 4
    $region21: #{tpu_custom_call.1} parent=1 // pred_fallthru
      _
    // Predicated region
    $region22: #{tpu_custom_call.1} parent=1 // pred_check
      _
    $region23: #{tpu_custom_call.1} parent=1 // pred_check_branch
      %70 = sbr.rel (0) target = $region25
    $region24: #{tpu_custom_call.1} parent=1 // pred_region
      _
    $region25: #{tpu_custom_call.1} parent=1 // pred_fallthru
      _
    // Predicated region
    $region26: #{tpu_custom_call.1} parent=1 // pred_check
      _
    $region27: #{tpu_custom_call.1} parent=1 // pred_check_branch
      %72 = sbr.rel (0) target = $region29
    $region28: #{tpu_custom_call.1} parent=1 // pred_region
      %74 = dma.done [#allocation3], 256
    $region29: #{tpu_custom_call.1} parent=1 // pred_fallthru
      _
    // Predicated region
    $region30: #{tpu_custom_call.1} parent=1 // pred_check
      _
    $region31: #{tpu_custom_call.1} parent=1 // pred_check_branch
      %76 = sbr.rel (0) target = $region33
    $region32: #{tpu_custom_call.1} parent=1 // pred_region
      %78 = dma.done [#allocation6], 3072
    $region33: #{tpu_custom_call.1} parent=1 // pred_fallthru
      _
    // Predicated region
    $region34: #{tpu_custom_call.1} parent=1 // pred_check
      _
    $region35: #{tpu_custom_call.1} parent=1 // pred_check_branch
      %80 = sbr.rel (0) target = $region37
    $region36: #{tpu_custom_call.1} parent=1 // pred_region
      %82 = dma.done [#allocation6], 3072
    $region37: #{tpu_custom_call.1} parent=1 // pred_fallthru
      _
    // Predicated region
    $region38: #{tpu_custom_call.1} parent=1 // pred_check
      _
    $region39: #{tpu_custom_call.1} parent=1 // pred_check_branch
      %84 = sbr.rel (0) target = $region41
    $region40: #{tpu_custom_call.1} parent=1 // pred_region
      %86 = dma.done [#allocation9], 1024
    $region41: #{tpu_custom_call.1} parent=1 // pred_fallthru
      _
    %v87 = vld [vmem:[#allocation2] sm:$0xff]
    %v88 = vld [vmem:[#allocation2 + $0x8] sm:$0xff]
    %v89 = vlaneseq
    %v90 = vshrl.u32 %v89, 7
    %vm91 = vcmp.ne.s32.totalorder %v90, 0
    %vm92 = vcmp.ne.s32.totalorder %v90, 7
    %vm93 = vcmp.gt.f32.partialorder %v87, 0.0
    %vm94 = vcmp.gt.f32.partialorder %v88, 0.0
    %v95 = vmul.f32 %v87, 0.2
    %v96 = vmul.f32 %v88, 0.2
    %v97 = vsel %vm93, %v87, %v95
    %v98 = vsel %vm94, %v88, %v96
    %v99 = vpack.c.bf16 %v98, %v97
    %v100 = vld [vmem:[#allocation5] sm:$0xf]
    %v101 = vld [vmem:[#allocation5 + $0x4] sm:$0xf]
    %v102 = vld [vmem:[#allocation5 + $0x8] sm:$0xf]
    %v103 = vld [vmem:[#allocation5 + $0xc] sm:$0xf]
    %v104 = vld [vmem:[#allocation5 + $0x10] sm:$0xf]
    %v105 = vld [vmem:[#allocation5 + $0x14] sm:$0xf]
    %v106 = vld [vmem:[#allocation5 + $0x18] sm:$0xf]
    %v107 = vld [vmem:[#allocation5 + $0x1c] sm:$0xf]
    %v108 = vld [vmem:[#allocation5 + $0x20] sm:$0xf]
    %v109 = vld [vmem:[#allocation5 + $0x24] sm:$0xf]
    %v110 = vld [vmem:[#allocation5 + $0x28] sm:$0xf]
    %v111 = vld [vmem:[#allocation5 + $0x2c] sm:$0xf]
    %v112 = vld [vmem:[#allocation5 + $0x30] sm:$0xf]
    %v113 = vld [vmem:[#allocation5 + $0x34] sm:$0xf]
    %v114 = vld [vmem:[#allocation5 + $0x38] sm:$0xf]
    %v115 = vld [vmem:[#allocation5 + $0x3c] sm:$0xf]
    %v132 = vunpack.c.l.b16 %v100
    %v133 = vunpack.c.l.b16 %v101
    %v134 = vunpack.c.l.b16 %v102
    %v135 = vunpack.c.l.b16 %v103
    %v136 = vunpack.c.l.b16 %v104
    %v137 = vunpack.c.l.b16 %v105
    %v138 = vunpack.c.l.b16 %v106
    %v139 = vunpack.c.l.b16 %v107
    %v140 = vunpack.c.l.b16 %v108
    %v141 = vunpack.c.l.b16 %v109
    %v142 = vunpack.c.l.b16 %v110
    %v143 = vunpack.c.l.b16 %v111
    %v144 = vunpack.c.l.b16 %v112
    %v145 = vunpack.c.l.b16 %v113
    %v146 = vunpack.c.l.b16 %v114
    %v147 = vunpack.c.l.b16 %v115
    %v148 = vpack.c.b16 %v133, %v132
    %v149 = vpack.c.b16 %v135, %v134
    %v150 = vpack.c.b16 %v137, %v136
    %v151 = vpack.c.b16 %v139, %v138
    %v152 = vpack.c.b16 %v141, %v140
    %v153 = vpack.c.b16 %v143, %v142
    %v154 = vpack.c.b16 %v145, %v144
    %v155 = vpack.c.b16 %v147, %v146
    %164 = vmatpush.bf16.msra.mxu0 %v155
    %165 = vmatpush.bf16.msra.mxu0 %v154
    %166 = vmatpush.bf16.msra.mxu0 %v153
    %167 = vmatpush.bf16.msra.mxu0 %v152
    %168 = vmatpush.bf16.msra.mxu0 %v151
    %169 = vmatpush.bf16.msra.mxu0 %v150
    %170 = vmatpush.bf16.msra.mxu0 %v149
    %171 = vmatpush.bf16.msra.mxu0 %v148
    %172 = vmatmul.bf16.gmra.mxu0 %v99
    %v173 = vpop.f32.mrf.mxu0
    %v174 = vadd.f32 0.0, %v173
    %v175 = vpop.f32.mrf.mxu0
    %v176 = vadd.f32 0.0, %v175
    %177 = vdwg.mxu0
    %s178 = scalar_lea.vmem [#allocation5], 64
    %v179 = vld [vmem:[%s178] sm:$0xf]
    %v180 = vld [vmem:[%s178 + $0x4] sm:$0xf]
    %v181 = vld [vmem:[%s178 + $0x8] sm:$0xf]
    %v182 = vld [vmem:[%s178 + $0xc] sm:$0xf]
    %v183 = vld [vmem:[%s178 + $0x10] sm:$0xf]
    %v184 = vld [vmem:[%s178 + $0x14] sm:$0xf]
    %v185 = vld [vmem:[%s178 + $0x18] sm:$0xf]
    %v186 = vld [vmem:[%s178 + $0x1c] sm:$0xf]
    %v187 = vld [vmem:[%s178 + $0x20] sm:$0xf]
    %v188 = vld [vmem:[%s178 + $0x24] sm:$0xf]
    %v189 = vld [vmem:[%s178 + $0x28] sm:$0xf]
    %v190 = vld [vmem:[%s178 + $0x2c] sm:$0xf]
    %v191 = vld [vmem:[%s178 + $0x30] sm:$0xf]
    %v192 = vld [vmem:[%s178 + $0x34] sm:$0xf]
    %v193 = vld [vmem:[%s178 + $0x38] sm:$0xf]
    %v194 = vld [vmem:[%s178 + $0x3c] sm:$0xf]
    %v211 = vunpack.c.l.b16 %v179
    %v212 = vunpack.c.l.b16 %v180
    %v213 = vunpack.c.l.b16 %v181
    %v214 = vunpack.c.l.b16 %v182
    %v215 = vunpack.c.l.b16 %v183
    %v216 = vunpack.c.l.b16 %v184
    %v217 = vunpack.c.l.b16 %v185
    %v218 = vunpack.c.l.b16 %v186
    %v219 = vunpack.c.l.b16 %v187
    %v220 = vunpack.c.l.b16 %v188
    %v221 = vunpack.c.l.b16 %v189
    %v222 = vunpack.c.l.b16 %v190
    %v223 = vunpack.c.l.b16 %v191
    %v224 = vunpack.c.l.b16 %v192
    %v225 = vunpack.c.l.b16 %v193
    %v226 = vunpack.c.l.b16 %v194
    %v227 = vpack.c.b16 %v212, %v211
    %v228 = vpack.c.b16 %v214, %v213
    %v229 = vpack.c.b16 %v216, %v215
    %v230 = vpack.c.b16 %v218, %v217
    %v231 = vpack.c.b16 %v220, %v219
    %v232 = vpack.c.b16 %v222, %v221
    %v233 = vpack.c.b16 %v224, %v223
    %v234 = vpack.c.b16 %v226, %v225
    %243 = vmatpush.bf16.msra.mxu0 %v234
    %244 = vmatpush.bf16.msra.mxu0 %v233
    %245 = vmatpush.bf16.msra.mxu0 %v232
    %246 = vmatpush.bf16.msra.mxu0 %v231
    %247 = vmatpush.bf16.msra.mxu0 %v230
    %248 = vmatpush.bf16.msra.mxu0 %v229
    %249 = vmatpush.bf16.msra.mxu0 %v228
    %250 = vmatpush.bf16.msra.mxu0 %v227
    %251 = vmatmul.bf16.gmra.mxu0 %v99
    %v252 = vpop.f32.mrf.mxu0
    %v253 = vadd.f32 0.0, %v252
    %v254 = vpop.f32.mrf.mxu0
    %v255 = vadd.f32 0.0, %v254
    %256 = vdwg.mxu0
    %s257 = scalar_lea.vmem [#allocation5], 128
    %v258 = vld [vmem:[%s257] sm:$0xf]
    %v259 = vld [vmem:[%s257 + $0x4] sm:$0xf]
    %v260 = vld [vmem:[%s257 + $0x8] sm:$0xf]
    %v261 = vld [vmem:[%s257 + $0xc] sm:$0xf]
    %v262 = vld [vmem:[%s257 + $0x10] sm:$0xf]
    %v263 = vld [vmem:[%s257 + $0x14] sm:$0xf]
    %v264 = vld [vmem:[%s257 + $0x18] sm:$0xf]
    %v265 = vld [vmem:[%s257 + $0x1c] sm:$0xf]
    %v266 = vld [vmem:[%s257 + $0x20] sm:$0xf]
    %v267 = vld [vmem:[%s257 + $0x24] sm:$0xf]
    %v268 = vld [vmem:[%s257 + $0x28] sm:$0xf]
    %v269 = vld [vmem:[%s257 + $0x2c] sm:$0xf]
    %v270 = vld [vmem:[%s257 + $0x30] sm:$0xf]
    %v271 = vld [vmem:[%s257 + $0x34] sm:$0xf]
    %v272 = vld [vmem:[%s257 + $0x38] sm:$0xf]
    %v273 = vld [vmem:[%s257 + $0x3c] sm:$0xf]
    %v290 = vunpack.c.l.b16 %v258
    %v291 = vunpack.c.l.b16 %v259
    %v292 = vunpack.c.l.b16 %v260
    %v293 = vunpack.c.l.b16 %v261
    %v294 = vunpack.c.l.b16 %v262
    %v295 = vunpack.c.l.b16 %v263
    %v296 = vunpack.c.l.b16 %v264
    %v297 = vunpack.c.l.b16 %v265
    %v298 = vunpack.c.l.b16 %v266
    %v299 = vunpack.c.l.b16 %v267
    %v300 = vunpack.c.l.b16 %v268
    %v301 = vunpack.c.l.b16 %v269
    %v302 = vunpack.c.l.b16 %v270
    %v303 = vunpack.c.l.b16 %v271
    %v304 = vunpack.c.l.b16 %v272
    %v305 = vunpack.c.l.b16 %v273
    %v306 = vpack.c.b16 %v291, %v290
    %v307 = vpack.c.b16 %v293, %v292
    %v308 = vpack.c.b16 %v295, %v294
    %v309 = vpack.c.b16 %v297, %v296
    %v310 = vpack.c.b16 %v299, %v298
    %v311 = vpack.c.b16 %v301, %v300
    %v312 = vpack.c.b16 %v303, %v302
    %v313 = vpack.c.b16 %v305, %v304
    %322 = vmatpush.bf16.msra.mxu0 %v313
    %323 = vmatpush.bf16.msra.mxu0 %v312
    %324 = vmatpush.bf16.msra.mxu0 %v311
    %325 = vmatpush.bf16.msra.mxu0 %v310
    %326 = vmatpush.bf16.msra.mxu0 %v309
    %327 = vmatpush.bf16.msra.mxu0 %v308
    %328 = vmatpush.bf16.msra.mxu0 %v307
    %329 = vmatpush.bf16.msra.mxu0 %v306
    %330 = vmatmul.bf16.gmra.mxu0 %v99
    %v331 = vpop.f32.mrf.mxu0
    %v332 = vadd.f32 0.0, %v331
    %v333 = vpop.f32.mrf.mxu0
    %v334 = vadd.f32 0.0, %v333
    %335 = vdwg.mxu0
    %vm338 = vcmask 1040384
    %v339 = vrot.slane %v174, 7
    %v340 = vrot.slane %v176, 7
    %v341 = vsel %vm338, %v339, %v340
    %v344 = vsel %vm338, 0.0, %v339
    %vm347 = vcmask 1046528
    %v348 = vrot.slane %v332, 1
    %v349 = vrot.slane %v334, 1
    %v350 = vsel %vm347, %v348, %v349
    %v353 = vsel %vm347, %v349, 0.0
    %v354 = vsel %vm91, %v344, 0.0
    %v355 = vsel %vm91, %v341, 0.0
    %v356 = vsel %vm92, %v350, 0.0
    %v357 = vsel %vm92, %v353, 0.0
    %v358 = vadd.f32 %v354, %v253
    %v359 = vadd.f32 %v355, %v255
    %v360 = vadd.f32 %v358, %v356
    %v361 = vadd.f32 %v359, %v357
    %v362 = vld [vmem:[%s2] sm:$0x1]
    %v364 = vperm.slane %v362, 0
    %v366 = vadd.f32 %v360, %v364
    %v367 = vadd.f32 %v361, %v364
    %vm368 = vcmp.gt.f32.partialorder %v366, 0.0
    %vm369 = vcmp.gt.f32.partialorder %v367, 0.0
    %v370 = vmul.f32 %v366, 0.2
    %v371 = vmul.f32 %v367, 0.2
    %v372 = vsel %vm368, %v366, %v370
    %v373 = vsel %vm369, %v367, %v371
    %v374 = vpack.c.bf16 %v373, %v372
    %v375 = vld [vmem:[#allocation7] sm:$0xf]
    %v376 = vld [vmem:[#allocation7 + $0x4] sm:$0xf]
    %v377 = vld [vmem:[#allocation7 + $0x8] sm:$0xf]
    %v378 = vld [vmem:[#allocation7 + $0xc] sm:$0xf]
    %v379 = vld [vmem:[#allocation7 + $0x10] sm:$0xf]
    %v380 = vld [vmem:[#allocation7 + $0x14] sm:$0xf]
    %v381 = vld [vmem:[#allocation7 + $0x18] sm:$0xf]
    %v382 = vld [vmem:[#allocation7 + $0x1c] sm:$0xf]
    %v383 = vld [vmem:[#allocation7 + $0x20] sm:$0xf]
    %v384 = vld [vmem:[#allocation7 + $0x24] sm:$0xf]
    %v385 = vld [vmem:[#allocation7 + $0x28] sm:$0xf]
    %v386 = vld [vmem:[#allocation7 + $0x2c] sm:$0xf]
    %v387 = vld [vmem:[#allocation7 + $0x30] sm:$0xf]
    %v388 = vld [vmem:[#allocation7 + $0x34] sm:$0xf]
    %v389 = vld [vmem:[#allocation7 + $0x38] sm:$0xf]
    %v390 = vld [vmem:[#allocation7 + $0x3c] sm:$0xf]
    %v407 = vunpack.c.l.b16 %v375
    %v408 = vunpack.c.l.b16 %v376
    %v409 = vunpack.c.l.b16 %v377
    %v410 = vunpack.c.l.b16 %v378
    %v411 = vunpack.c.l.b16 %v379
    %v412 = vunpack.c.l.b16 %v380
    %v413 = vunpack.c.l.b16 %v381
    %v414 = vunpack.c.l.b16 %v382
    %v415 = vunpack.c.l.b16 %v383
    %v416 = vunpack.c.l.b16 %v384
    %v417 = vunpack.c.l.b16 %v385
    %v418 = vunpack.c.l.b16 %v386
    %v419 = vunpack.c.l.b16 %v387
    %v420 = vunpack.c.l.b16 %v388
    %v421 = vunpack.c.l.b16 %v389
    %v422 = vunpack.c.l.b16 %v390
    %v423 = vpack.c.b16 %v408, %v407
    %v424 = vpack.c.b16 %v410, %v409
    %v425 = vpack.c.b16 %v412, %v411
    %v426 = vpack.c.b16 %v414, %v413
    %v427 = vpack.c.b16 %v416, %v415
    %v428 = vpack.c.b16 %v418, %v417
    %v429 = vpack.c.b16 %v420, %v419
    %v430 = vpack.c.b16 %v422, %v421
    %439 = vmatpush.bf16.msra.mxu0 %v430
    %440 = vmatpush.bf16.msra.mxu0 %v429
    %441 = vmatpush.bf16.msra.mxu0 %v428
    %442 = vmatpush.bf16.msra.mxu0 %v427
    %443 = vmatpush.bf16.msra.mxu0 %v426
    %444 = vmatpush.bf16.msra.mxu0 %v425
    %445 = vmatpush.bf16.msra.mxu0 %v424
    %446 = vmatpush.bf16.msra.mxu0 %v423
    %447 = vmatmul.bf16.gmra.mxu0 %v374
    %v448 = vpop.f32.mrf.mxu0
    %v449 = vadd.f32 0.0, %v448
    %v450 = vpop.f32.mrf.mxu0
    %v451 = vadd.f32 0.0, %v450
    %452 = vdwg.mxu0
    %s453 = scalar_lea.vmem [#allocation7], 64
    %v454 = vld [vmem:[%s453] sm:$0xf]
    %v455 = vld [vmem:[%s453 + $0x4] sm:$0xf]
    %v456 = vld [vmem:[%s453 + $0x8] sm:$0xf]
    %v457 = vld [vmem:[%s453 + $0xc] sm:$0xf]
    %v458 = vld [vmem:[%s453 + $0x10] sm:$0xf]
    %v459 = vld [vmem:[%s453 + $0x14] sm:$0xf]
    %v460 = vld [vmem:[%s453 + $0x18] sm:$0xf]
    %v461 = vld [vmem:[%s453 + $0x1c] sm:$0xf]
    %v462 = vld [vmem:[%s453 + $0x20] sm:$0xf]
    %v463 = vld [vmem:[%s453 + $0x24] sm:$0xf]
    %v464 = vld [vmem:[%s453 + $0x28] sm:$0xf]
    %v465 = vld [vmem:[%s453 + $0x2c] sm:$0xf]
    %v466 = vld [vmem:[%s453 + $0x30] sm:$0xf]
    %v467 = vld [vmem:[%s453 + $0x34] sm:$0xf]
    %v468 = vld [vmem:[%s453 + $0x38] sm:$0xf]
    %v469 = vld [vmem:[%s453 + $0x3c] sm:$0xf]
    %v486 = vunpack.c.l.b16 %v454
    %v487 = vunpack.c.l.b16 %v455
    %v488 = vunpack.c.l.b16 %v456
    %v489 = vunpack.c.l.b16 %v457
    %v490 = vunpack.c.l.b16 %v458
    %v491 = vunpack.c.l.b16 %v459
    %v492 = vunpack.c.l.b16 %v460
    %v493 = vunpack.c.l.b16 %v461
    %v494 = vunpack.c.l.b16 %v462
    %v495 = vunpack.c.l.b16 %v463
    %v496 = vunpack.c.l.b16 %v464
    %v497 = vunpack.c.l.b16 %v465
    %v498 = vunpack.c.l.b16 %v466
    %v499 = vunpack.c.l.b16 %v467
    %v500 = vunpack.c.l.b16 %v468
    %v501 = vunpack.c.l.b16 %v469
    %v502 = vpack.c.b16 %v487, %v486
    %v503 = vpack.c.b16 %v489, %v488
    %v504 = vpack.c.b16 %v491, %v490
    %v505 = vpack.c.b16 %v493, %v492
    %v506 = vpack.c.b16 %v495, %v494
    %v507 = vpack.c.b16 %v497, %v496
    %v508 = vpack.c.b16 %v499, %v498
    %v509 = vpack.c.b16 %v501, %v500
    %518 = vmatpush.bf16.msra.mxu0 %v509
    %519 = vmatpush.bf16.msra.mxu0 %v508
    %520 = vmatpush.bf16.msra.mxu0 %v507
    %521 = vmatpush.bf16.msra.mxu0 %v506
    %522 = vmatpush.bf16.msra.mxu0 %v505
    %523 = vmatpush.bf16.msra.mxu0 %v504
    %524 = vmatpush.bf16.msra.mxu0 %v503
    %525 = vmatpush.bf16.msra.mxu0 %v502
    %526 = vmatmul.bf16.gmra.mxu0 %v374
    %v527 = vpop.f32.mrf.mxu0
    %v528 = vadd.f32 0.0, %v527
    %v529 = vpop.f32.mrf.mxu0
    %v530 = vadd.f32 0.0, %v529
    %531 = vdwg.mxu0
    %s532 = scalar_lea.vmem [#allocation7], 128
    %v533 = vld [vmem:[%s532] sm:$0xf]
    %v534 = vld [vmem:[%s532 + $0x4] sm:$0xf]
    %v535 = vld [vmem:[%s532 + $0x8] sm:$0xf]
    %v536 = vld [vmem:[%s532 + $0xc] sm:$0xf]
    %v537 = vld [vmem:[%s532 + $0x10] sm:$0xf]
    %v538 = vld [vmem:[%s532 + $0x14] sm:$0xf]
    %v539 = vld [vmem:[%s532 + $0x18] sm:$0xf]
    %v540 = vld [vmem:[%s532 + $0x1c] sm:$0xf]
    %v541 = vld [vmem:[%s532 + $0x20] sm:$0xf]
    %v542 = vld [vmem:[%s532 + $0x24] sm:$0xf]
    %v543 = vld [vmem:[%s532 + $0x28] sm:$0xf]
    %v544 = vld [vmem:[%s532 + $0x2c] sm:$0xf]
    %v545 = vld [vmem:[%s532 + $0x30] sm:$0xf]
    %v546 = vld [vmem:[%s532 + $0x34] sm:$0xf]
    %v547 = vld [vmem:[%s532 + $0x38] sm:$0xf]
    %v548 = vld [vmem:[%s532 + $0x3c] sm:$0xf]
    %v565 = vunpack.c.l.b16 %v533
    %v566 = vunpack.c.l.b16 %v534
    %v567 = vunpack.c.l.b16 %v535
    %v568 = vunpack.c.l.b16 %v536
    %v569 = vunpack.c.l.b16 %v537
    %v570 = vunpack.c.l.b16 %v538
    %v571 = vunpack.c.l.b16 %v539
    %v572 = vunpack.c.l.b16 %v540
    %v573 = vunpack.c.l.b16 %v541
    %v574 = vunpack.c.l.b16 %v542
    %v575 = vunpack.c.l.b16 %v543
    %v576 = vunpack.c.l.b16 %v544
    %v577 = vunpack.c.l.b16 %v545
    %v578 = vunpack.c.l.b16 %v546
    %v579 = vunpack.c.l.b16 %v547
    %v580 = vunpack.c.l.b16 %v548
    %v581 = vpack.c.b16 %v566, %v565
    %v582 = vpack.c.b16 %v568, %v567
    %v583 = vpack.c.b16 %v570, %v569
    %v584 = vpack.c.b16 %v572, %v571
    %v585 = vpack.c.b16 %v574, %v573
    %v586 = vpack.c.b16 %v576, %v575
    %v587 = vpack.c.b16 %v578, %v577
    %v588 = vpack.c.b16 %v580, %v579
    %597 = vmatpush.bf16.msra.mxu0 %v588
    %598 = vmatpush.bf16.msra.mxu0 %v587
    %599 = vmatpush.bf16.msra.mxu0 %v586
    %600 = vmatpush.bf16.msra.mxu0 %v585
    %601 = vmatpush.bf16.msra.mxu0 %v584
    %602 = vmatpush.bf16.msra.mxu0 %v583
    %603 = vmatpush.bf16.msra.mxu0 %v582
    %604 = vmatpush.bf16.msra.mxu0 %v581
    %605 = vmatmul.bf16.gmra.mxu0 %v374
    %v606 = vpop.f32.mrf.mxu0
    %v607 = vadd.f32 0.0, %v606
    %v608 = vpop.f32.mrf.mxu0
    %v609 = vadd.f32 0.0, %v608
    %610 = vdwg.mxu0
    %v613 = vrot.slane %v449, 7
    %v614 = vrot.slane %v451, 7
    %v615 = vsel %vm338, %v613, %v614
    %v618 = vsel %vm338, 0.0, %v613
    %v621 = vrot.slane %v607, 1
    %v622 = vrot.slane %v609, 1
    %v623 = vsel %vm347, %v621, %v622
    %v626 = vsel %vm347, %v622, 0.0
    %v627 = vsel %vm91, %v618, 0.0
    %v628 = vsel %vm91, %v615, 0.0
    %v629 = vsel %vm92, %v623, 0.0
    %v630 = vsel %vm92, %v626, 0.0
    %v631 = vadd.f32 %v627, %v528
    %v632 = vadd.f32 %v628, %v530
    %v633 = vadd.f32 %v631, %v629
    %v634 = vadd.f32 %v632, %v630
    %v635 = vpack.c.bf16 %v88, %v87
    %v636 = vld [vmem:[#allocation8] sm:$0xf]
    %v637 = vld [vmem:[#allocation8 + $0x4] sm:$0xf]
    %v638 = vld [vmem:[#allocation8 + $0x8] sm:$0xf]
    %v639 = vld [vmem:[#allocation8 + $0xc] sm:$0xf]
    %v640 = vld [vmem:[#allocation8 + $0x10] sm:$0xf]
    %v641 = vld [vmem:[#allocation8 + $0x14] sm:$0xf]
    %v642 = vld [vmem:[#allocation8 + $0x18] sm:$0xf]
    %v643 = vld [vmem:[#allocation8 + $0x1c] sm:$0xf]
    %v644 = vld [vmem:[#allocation8 + $0x20] sm:$0xf]
    %v645 = vld [vmem:[#allocation8 + $0x24] sm:$0xf]
    %v646 = vld [vmem:[#allocation8 + $0x28] sm:$0xf]
    %v647 = vld [vmem:[#allocation8 + $0x2c] sm:$0xf]
    %v648 = vld [vmem:[#allocation8 + $0x30] sm:$0xf]
    %v649 = vld [vmem:[#allocation8 + $0x34] sm:$0xf]
    %v650 = vld [vmem:[#allocation8 + $0x38] sm:$0xf]
    %v651 = vld [vmem:[#allocation8 + $0x3c] sm:$0xf]
    %v668 = vunpack.c.l.b16 %v636
    %v669 = vunpack.c.l.b16 %v637
    %v670 = vunpack.c.l.b16 %v638
    %v671 = vunpack.c.l.b16 %v639
    %v672 = vunpack.c.l.b16 %v640
    %v673 = vunpack.c.l.b16 %v641
    %v674 = vunpack.c.l.b16 %v642
    %v675 = vunpack.c.l.b16 %v643
    %v676 = vunpack.c.l.b16 %v644
    %v677 = vunpack.c.l.b16 %v645
    %v678 = vunpack.c.l.b16 %v646
    %v679 = vunpack.c.l.b16 %v647
    %v680 = vunpack.c.l.b16 %v648
    %v681 = vunpack.c.l.b16 %v649
    %v682 = vunpack.c.l.b16 %v650
    %v683 = vunpack.c.l.b16 %v651
    %v684 = vpack.c.b16 %v669, %v668
    %v685 = vpack.c.b16 %v671, %v670
    %v686 = vpack.c.b16 %v673, %v672
    %v687 = vpack.c.b16 %v675, %v674
    %v688 = vpack.c.b16 %v677, %v676
    %v689 = vpack.c.b16 %v679, %v678
    %v690 = vpack.c.b16 %v681, %v680
    %v691 = vpack.c.b16 %v683, %v682
    %700 = vmatpush.bf16.msra.mxu0 %v691
    %701 = vmatpush.bf16.msra.mxu0 %v690
    %702 = vmatpush.bf16.msra.mxu0 %v689
    %703 = vmatpush.bf16.msra.mxu0 %v688
    %704 = vmatpush.bf16.msra.mxu0 %v687
    %705 = vmatpush.bf16.msra.mxu0 %v686
    %706 = vmatpush.bf16.msra.mxu0 %v685
    %707 = vmatpush.bf16.msra.mxu0 %v684
    %708 = vmatmul.bf16.gmra.mxu0 %v635
    %v709 = vpop.f32.mrf.mxu0
    %v710 = vadd.f32 0.0, %v709
    %v711 = vpop.f32.mrf.mxu0
    %v712 = vadd.f32 0.0, %v711
    %713 = vdwg.mxu0
    %v714 = vadd.f32 %v633, %v710
    %v715 = vadd.f32 %v634, %v712
    %v716 = vld [vmem:[%s5] sm:$0x1]
    %v718 = vperm.slane %v716, 0
    %v720 = vadd.f32 %v714, %v718
    %v721 = vadd.f32 %v715, %v718
    %722 = vst [vmem:[#allocation10] sm:$0xff] %v720
    %723 = vst [vmem:[#allocation10 + $0x8] sm:$0xff] %v721
    // Predicated region
    $region42: #{tpu_custom_call.1} parent=1 // pred_check
      _
    $region43: #{tpu_custom_call.1} parent=1 // pred_check_branch
      %725 = sbr.rel (0) target = $region45
    $region44: #{tpu_custom_call.1} parent=1 // pred_region
      %727 = vsyncadd [#allocation4], 0
      %s728 = sshll.u32 [#allocation10], 4
      %s729 = int_to_ptr.vmem [resolvable:$true] %s728
      %s730 = sshll.u32 %s6, 4
      %s731 = int_to_ptr.hbm [resolvable:$true] %s730
      %736 = dma.vmem_to_hbm [thread:$0]  %s729, 256, %s731, [#allocation4], 128, 128, 8
    $region45: #{tpu_custom_call.1} parent=1 // pred_fallthru
      _
    // Predicated region
    $region46: #{tpu_custom_call.1} parent=1 // pred_check
      _
    $region47: #{tpu_custom_call.1} parent=1 // pred_check_branch
      %738 = sbr.rel (0) target = $region49
    $region48: #{tpu_custom_call.1} parent=1 // pred_region
      %740 = dma.done [#allocation4], 256
    $region49: #{tpu_custom_call.1} parent=1 // pred_fallthru
      _
    %741 = vsyncpa [#allocation3], 1
    %742 = vsyncpa [#allocation6], 1
    %743 = vsyncpa [#allocation9], 1
    %744 = vsyncpa [#allocation4], 1

</llo_original>
